<compile_context>
chip_gen: v7x
topology: tpu7x:2x2x1
jax: 0.10.0
libtpu: 0.0.40
codegen_flags: <defaults>
</compile_context>

<pallas_src>
import jax
import jax.numpy as jnp
from jax.experimental import pallas as pl
from jax.experimental.pallas import tpu as pltpu


def _conv1x1_relu_kernel(x_ref, w_ref, b_ref, o_ref):
    """1x1 conv + bias + relu, channels-first, spatial on lanes.

    x_ref: (Nb, Cin, Sp)   zero-padded images, spatial flattened & lane-padded
    w_ref: (Cout, Cin)
    b_ref: (Cout, 1)
    o_ref: (Nb, Cout, Sp)  lane-dense output
    """
    nb, cin, sp = x_ref.shape
    cout = o_ref.shape[1]

    w = w_ref[...].astype(jnp.float32)            # (Cout, Cin)
    b = b_ref[...].astype(jnp.float32)            # (Cout, 1)
    # Hoisted once (broadcast_in_dim is not CSE'd inside loops).
    bias_slab = jnp.broadcast_to(b, (cout, sp))   # (Cout, Sp) f32

    for n in range(nb):                           # static unroll (Nb is 1 or 2)
        x = x_ref[n].astype(jnp.float32)          # (Cin, Sp)
        # out[o, s] = relu(b[o] + sum_c w[o, c] * x[c, s])  -- Cin rank-1 FMAs
        acc = bias_slab
        for c in range(cin):                      # static unroll; pure VPU
            acc = acc + w[:, c:c + 1] * x[c:c + 1, :]
        o_ref[n, :, :] = jnp.maximum(acc, 0.0).astype(o_ref.dtype)


def _num_tensorcores_per_device():
    """Best-effort TC-per-device count; falls back to 1 (never raises)."""
    try:
        n = getattr(jax.devices()[0], "num_cores", 1) or 1
        return max(1, int(n))
    except Exception:
        return 1


def conv1x1_relu(x_nchw, weight, bias, *, padding=1):
    """x_nchw: (N, Cin, H, W); weight: (Cout, Cin, 1, 1); bias: (Cout,)."""
    N, Cin, H, W = x_nchw.shape
    Cout = weight.shape[0]
    Hp, Wp = H + 2 * padding, W + 2 * padding
    S = Hp * Wp
    # Pad flattened spatial axis up to a multiple of 128 -> unmasked vregs.
    Sp = ((S + 127) // 128) * 128

    # Only glue ops: spatial zero-pad (border of a padded 1x1 conv becomes
    # relu(bias)) + lane-tail zero-pad.  Reshapes are contiguous (free); no
    # transposes anywhere.
    x_pad = jnp.pad(
        x_nchw, ((0, 0), (0, 0), (padding, padding), (padding, padding)))
    x_flat = x_pad.reshape(N, Cin, S)
    x_flat = jnp.pad(x_flat, ((0, 0), (0, 0), (0, Sp - S)))    # (N, Cin, Sp)
    w_mat = weight.reshape(Cout, Cin)                          # (Cout, Cin)
    b_mat = bias.reshape(Cout, 1)                              # (Cout, 1)

    # Grid sized to the TensorCore count: 1 step on single-TC parts, one image
    # per core on multi-TC parts (v7x), never more steps than images.
    tcs = _num_tensorcores_per_device()
    num_tiles = tcs if (tcs > 1 and N % tcs == 0) else 1
    num_tiles = max(1, min(num_tiles, N))
    Nb = N // num_tiles

    itemsize = jnp.dtype(x_nchw.dtype).itemsize
    cost = pl.CostEstimate(
        flops=2 * N * Cout * Cin * Sp + 2 * N * Cout * Sp,
        transcendentals=0,
        bytes_accessed=(x_flat.size + w_mat.size + b_mat.size) * itemsize
        + N * Cout * Sp * itemsize,
    )

    out_flat = pl.pallas_call(
        _conv1x1_relu_kernel,
        out_shape=jax.ShapeDtypeStruct((N, Cout, Sp), x_nchw.dtype),
        grid=(num_tiles,),
        in_specs=[
            pl.BlockSpec((Nb, Cin, Sp), lambda i: (i, 0, 0)),   # image slab
            pl.BlockSpec((Cout, Cin), lambda i: (0, 0)),        # weights (const)
            pl.BlockSpec((Cout, 1), lambda i: (0, 0)),          # bias (const)
        ],
        out_specs=pl.BlockSpec((Nb, Cout, Sp), lambda i: (i, 0, 0)),
        compiler_params=pltpu.CompilerParams(
            dimension_semantics=("parallel",)),
        cost_estimate=cost,
    )(x_flat, w_mat, b_mat)

    # Drop the lane-padding tail; contiguous reshape back to NCHW-padded.
    return out_flat[:, :, :S].reshape(N, Cout, Hp, Wp)


if __name__ == "__main__":
    key = jax.random.PRNGKey(0)
    kx, kw, kb = jax.random.split(key, 3)

    # Small shapes consistent with the module: batch=2, Cin=3, spatial=16.
    N, Cin, H, W = 2, 3, 16, 16
    Cout = 8

    x = jax.random.normal(kx, (N, Cin, H, W), dtype=jnp.float32)
    # Deterministic parameter init (shapes from Conv2d(3, 8, 1)).
    fan_in = Cin * 1 * 1
    bound = 1.0 / (fan_in ** 0.5)
    weight = jax.random.uniform(kw, (Cout, Cin, 1, 1), jnp.float32, -bound, bound)
    bias = jax.random.uniform(kb, (Cout,), jnp.float32, -bound, bound)

    out = conv1x1_relu(x, weight, bias, padding=1)
    jax.block_until_ready(out)

    # Lightweight sanity check against plain-JAX reference.
    x_pad = jnp.pad(x, ((0, 0), (0, 0), (1, 1), (1, 1)))
    ref = jnp.einsum("nchw,oc->nohw", x_pad, weight.reshape(Cout, Cin)) \
        + bias[None, :, None, None]
    ref = jnp.maximum(ref, 0.0)
    assert out.shape == (N, Cout, H + 2, W + 2), out.shape
    assert jnp.allclose(out, ref, atol=1e-5, rtol=1e-5)

    print("KERNEL_OK")
</pallas_src>

<mosaic_0001>
module attributes {stable_mosaic.version = 11 : i64} {
  func.func @_conv1x1_relu_kernel(%arg0: i32, %arg1: memref<2x3x384xf32, #tpu.memory_space<vmem>>, %arg2: memref<8x3xf32, #tpu.memory_space<vmem>>, %arg3: memref<8x1xf32, #tpu.memory_space<vmem>>, %arg4: memref<2x8x384xf32, #tpu.memory_space<vmem>>) attributes {dimension_semantics = [#tpu.dimension_semantics<parallel>], iteration_bounds = array<i64: 1>, scalar_prefetch = 0 : i64, scratch_operands = 0 : i64, tpu.core_type = #tpu.core_type<tc>, window_params = [{transform_indices = @transform_0, window_bounds = array<i64: 2, 3, 384>}, {pipeline_mode = #tpu.pipeline_mode<synchronous>, transform_indices = @transform_1, window_bounds = array<i64: 8, 3>}, {pipeline_mode = #tpu.pipeline_mode<synchronous>, transform_indices = @transform_2, window_bounds = array<i64: 8, 1>}, {transform_indices = @transform_3, window_bounds = array<i64: 2, 8, 384>}]} {
    %c0 = arith.constant 0 : index
    %c0_0 = arith.constant 0 : index
    %0 = vector.load %arg2[%c0, %c0_0] : memref<8x3xf32, #tpu.memory_space<vmem>>, vector<8x3xf32>
    %c0_1 = arith.constant 0 : index
    %c0_2 = arith.constant 0 : index
    %1 = vector.load %arg3[%c0_1, %c0_2] : memref<8x1xf32, #tpu.memory_space<vmem>>, vector<8x1xf32>
    %2 = vector.shape_cast %1 : vector<8x1xf32> to vector<8x1xf32>
    %3 = vector.broadcast %2 : vector<8x1xf32> to vector<8x384xf32>
    %c0_3 = arith.constant 0 : index
    %c0_4 = arith.constant 0 : index
    %c0_5 = arith.constant 0 : index
    %4 = vector.load %arg1[%c0_3, %c0_4, %c0_5] : memref<2x3x384xf32, #tpu.memory_space<vmem>>, vector<1x3x384xf32>
    %5 = vector.shape_cast %4 : vector<1x3x384xf32> to vector<3x384xf32>
    %6 = vector.extract_strided_slice %0 {offsets = [0, 0], sizes = [8, 1], strides = [1, 1]} : vector<8x3xf32> to vector<8x1xf32>
    %7 = vector.extract_strided_slice %5 {offsets = [0, 0], sizes = [1, 384], strides = [1, 1]} : vector<3x384xf32> to vector<1x384xf32>
    %8 = vector.broadcast %6 : vector<8x1xf32> to vector<8x384xf32>
    %9 = vector.broadcast %7 : vector<1x384xf32> to vector<8x384xf32>
    %10 = arith.mulf %8, %9 : vector<8x384xf32>
    %11 = arith.addf %3, %10 : vector<8x384xf32>
    %12 = vector.extract_strided_slice %0 {offsets = [0, 1], sizes = [8, 1], strides = [1, 1]} : vector<8x3xf32> to vector<8x1xf32>
    %13 = vector.extract_strided_slice %5 {offsets = [1, 0], sizes = [1, 384], strides = [1, 1]} : vector<3x384xf32> to vector<1x384xf32>
    %14 = vector.broadcast %12 : vector<8x1xf32> to vector<8x384xf32>
    %15 = vector.broadcast %13 : vector<1x384xf32> to vector<8x384xf32>
    %16 = arith.mulf %14, %15 : vector<8x384xf32>
    %17 = arith.addf %11, %16 : vector<8x384xf32>
    %18 = vector.extract_strided_slice %0 {offsets = [0, 2], sizes = [8, 1], strides = [1, 1]} : vector<8x3xf32> to vector<8x1xf32>
    %19 = vector.extract_strided_slice %5 {offsets = [2, 0], sizes = [1, 384], strides = [1, 1]} : vector<3x384xf32> to vector<1x384xf32>
    %20 = vector.broadcast %18 : vector<8x1xf32> to vector<8x384xf32>
    %21 = vector.broadcast %19 : vector<1x384xf32> to vector<8x384xf32>
    %22 = arith.mulf %20, %21 : vector<8x384xf32>
    %23 = arith.addf %17, %22 : vector<8x384xf32>
    %cst = arith.constant 0.000000e+00 : f32
    %24 = vector.broadcast %cst : f32 to vector<8x384xf32>
    %25 = arith.maximumf %23, %24 : vector<8x384xf32>
    %c0_6 = arith.constant 0 : index
    %c0_7 = arith.constant 0 : index
    %c0_8 = arith.constant 0 : index
    %26 = vector.load %arg4[%c0_6, %c0_7, %c0_8] : memref<2x8x384xf32, #tpu.memory_space<vmem>>, vector<1x8x384xf32>
    %27 = vector.shape_cast %26 : vector<1x8x384xf32> to vector<8x384xf32>
    %28 = vector.shape_cast %25 : vector<8x384xf32> to vector<1x8x384xf32>
    tpu.vector_store %arg4[%c0_6, %c0_7, %c0_8], %28 {strides = array<i32>} : memref<2x8x384xf32, #tpu.memory_space<vmem>>, vector<1x8x384xf32>,
    %c1 = arith.constant 1 : index
    %c0_9 = arith.constant 0 : index
    %c0_10 = arith.constant 0 : index
    %29 = vector.load %arg1[%c1, %c0_9, %c0_10] : memref<2x3x384xf32, #tpu.memory_space<vmem>>, vector<1x3x384xf32>
    %30 = vector.shape_cast %29 : vector<1x3x384xf32> to vector<3x384xf32>
    %31 = vector.extract_strided_slice %0 {offsets = [0, 0], sizes = [8, 1], strides = [1, 1]} : vector<8x3xf32> to vector<8x1xf32>
    %32 = vector.extract_strided_slice %30 {offsets = [0, 0], sizes = [1, 384], strides = [1, 1]} : vector<3x384xf32> to vector<1x384xf32>
    %33 = vector.broadcast %31 : vector<8x1xf32> to vector<8x384xf32>
    %34 = vector.broadcast %32 : vector<1x384xf32> to vector<8x384xf32>
    %35 = arith.mulf %33, %34 : vector<8x384xf32>
    %36 = arith.addf %3, %35 : vector<8x384xf32>
    %37 = vector.extract_strided_slice %0 {offsets = [0, 1], sizes = [8, 1], strides = [1, 1]} : vector<8x3xf32> to vector<8x1xf32>
    %38 = vector.extract_strided_slice %30 {offsets = [1, 0], sizes = [1, 384], strides = [1, 1]} : vector<3x384xf32> to vector<1x384xf32>
    %39 = vector.broadcast %37 : vector<8x1xf32> to vector<8x384xf32>
    %40 = vector.broadcast %38 : vector<1x384xf32> to vector<8x384xf32>
    %41 = arith.mulf %39, %40 : vector<8x384xf32>
    %42 = arith.addf %36, %41 : vector<8x384xf32>
    %43 = vector.extract_strided_slice %0 {offsets = [0, 2], sizes = [8, 1], strides = [1, 1]} : vector<8x3xf32> to vector<8x1xf32>
    %44 = vector.extract_strided_slice %30 {offsets = [2, 0], sizes = [1, 384], strides = [1, 1]} : vector<3x384xf32> to vector<1x384xf32>
    %45 = vector.broadcast %43 : vector<8x1xf32> to vector<8x384xf32>
    %46 = vector.broadcast %44 : vector<1x384xf32> to vector<8x384xf32>
    %47 = arith.mulf %45, %46 : vector<8x384xf32>
    %48 = arith.addf %42, %47 : vector<8x384xf32>
    %cst_11 = arith.constant 0.000000e+00 : f32
    %49 = vector.broadcast %cst_11 : f32 to vector<8x384xf32>
    %50 = arith.maximumf %48, %49 : vector<8x384xf32>
    %c1_12 = arith.constant 1 : index
    %c0_13 = arith.constant 0 : index
    %c0_14 = arith.constant 0 : index
    %51 = vector.load %arg4[%c1_12, %c0_13, %c0_14] : memref<2x8x384xf32, #tpu.memory_space<vmem>>, vector<1x8x384xf32>
    %52 = vector.shape_cast %51 : vector<1x8x384xf32> to vector<8x384xf32>
    %53 = vector.shape_cast %50 : vector<8x384xf32> to vector<1x8x384xf32>
    tpu.vector_store %arg4[%c1_12, %c0_13, %c0_14], %53 {strides = array<i32>} : memref<2x8x384xf32, #tpu.memory_space<vmem>>, vector<1x8x384xf32>,
    return
  }
  func.func @transform_0(%arg0: i32) -> (i32, i32, i32) {
    %c0_i32 = arith.constant 0 : i32
    %c0_i32_0 = arith.constant 0 : i32
    %c0_i32_1 = arith.constant 0 : i32
    return %arg0, %c0_i32, %c0_i32_0 : i32, i32, i32
  }
  func.func @transform_1(%arg0: i32) -> (i32, i32) {
    %c0_i32 = arith.constant 0 : i32
    %c0_i32_0 = arith.constant 0 : i32
    %c0_i32_1 = arith.constant 0 : i32
    return %c0_i32, %c0_i32_0 : i32, i32
  }
  func.func @transform_2(%arg0: i32) -> (i32, i32) {
    %c0_i32 = arith.constant 0 : i32
    %c0_i32_0 = arith.constant 0 : i32
    %c0_i32_1 = arith.constant 0 : i32
    return %c0_i32, %c0_i32_0 : i32, i32
  }
  func.func @transform_3(%arg0: i32) -> (i32, i32, i32) {
    %c0_i32 = arith.constant 0 : i32
    %c0_i32_0 = arith.constant 0 : i32
    %c0_i32_1 = arith.constant 0 : i32
    return %arg0, %c0_i32, %c0_i32_0 : i32, i32, i32
  }
}

</mosaic_0001>

<llo_original>
// kernel: tpu_custom_call.1
$region0: #{tpu_custom_call.1}
  #allocation0 [shape = 'u32[]', space=smem, size = 0x4, offset = 0x4, fixed_abs, tag = 'smem constant byte address 0x4 - core index']
  #allocation1 [shape = 'u32[144,128]{1,0:T(1,128)}', space=vmem, size = 0x12000, scoped, tag = 'internal scratch']
  %s0 = inlined_call_operand.vmem [shape: f32[2,3,384], index: 0, kind: input, shape index: {}]
  %s1 = inlined_call_operand.vmem [shape: f32[8,3], index: 1, kind: input, shape index: {}]
  %s2 = inlined_call_operand.vmem [shape: f32[8,1], index: 2, kind: input, shape index: {}]
  %s3 = inlined_call_operand.hbm [shape: f32[2,8,384], index: 3, kind: output, shape index: {}]
  %s4 = sld [smem:[#allocation0]]
  $region22: #{tpu_custom_call.1} parent=0
    _
  %s6 = ssub.s32 1, %s4
  %s7 = scalar_select 0, %s6, %s4
  $region1: #{tpu_custom_call.1} parent=0
    #allocation2 [shape = 'u8[24576]{0}', space=vmem, size = 0x6000, scoped, tag = 'output window, operand 0, single buffered']
    #allocation3 [shape = 's32[1]{0}', space=sflag, size = 0x4, scoped, tag = 'scoped memory for tpu_custom_call.1']
    %8 = vsyncpa [#allocation3], 0
    // Predicated region
    $region2: #{tpu_custom_call.1} parent=1 // pred_check
      _
    $region3: #{tpu_custom_call.1} parent=1 // pred_check_branch
      %10 = sbr.rel (0) target = $region5
    $region4: #{tpu_custom_call.1} parent=1 // pred_region
      _
    $region5: #{tpu_custom_call.1} parent=1 // pred_fallthru
      _
    // Predicated region
    $region6: #{tpu_custom_call.1} parent=1 // pred_check
      _
    $region7: #{tpu_custom_call.1} parent=1 // pred_check_branch
      %12 = sbr.rel (0) target = $region9
    $region8: #{tpu_custom_call.1} parent=1 // pred_region
      _
    $region9: #{tpu_custom_call.1} parent=1 // pred_fallthru
      _
    // Predicated region
    $region10: #{tpu_custom_call.1} parent=1 // pred_check
      _
    $region11: #{tpu_custom_call.1} parent=1 // pred_check_branch
      %14 = sbr.rel (0) target = $region13
    $region12: #{tpu_custom_call.1} parent=1 // pred_region
      _
    $region13: #{tpu_custom_call.1} parent=1 // pred_fallthru
      _
    %v15 = vld [vmem:[%s1] sm:$0xff]
    %v16 = vld [vmem:[%s2] sm:$0xff]
    %18 = vset.pattern.permute.xlu0 0
    %19 = vperm.xlu0 %18, %v16
    %v20 = vpop.permute.xlu0 %19
    %v22 = vld [vmem:[%s0] sm:$0x77]
    %v23 = vld [vmem:[%s0 + $0x8] sm:$0x7]
    %25 = vset.pattern.permute.xlu0 0
    %26 = vperm.xlu0 %25, %v15
    %v27 = vpop.permute.xlu0 %26
    %v31 = vlaneseq
    %v32 = vshrl.u32 %v31, 7
    %v33 = vsub.s32 0, %v32
    %v34 = vrot.slane %v22, %v33
    %v35 = vlaneseq
    %v36 = vshrl.u32 %v35, 7
    %v37 = vsub.s32 4, %v36
    %v38 = vrot.slane %v22, %v37
    %v39 = vlaneseq
    %v40 = vshrl.u32 %v39, 7
    %v41 = vsub.s32 0, %v40
    %v42 = vrot.slane %v23, %v41
    %v46 = vlaneseq
    %v47 = vshrl.u32 %v46, 7
    %v48 = vsub.s32 0, %v47
    %v49 = vrot.slane %v34, %v48
    %v50 = vlaneseq
    %v51 = vshrl.u32 %v50, 7
    %v52 = vsub.s32 0, %v51
    %v53 = vrot.slane %v38, %v52
    %v54 = vlaneseq
    %v55 = vshrl.u32 %v54, 7
    %v56 = vsub.s32 0, %v55
    %v57 = vrot.slane %v42, %v56
    %v58 = vmul.f32 %v27, %v49
    %v59 = vmul.f32 %v27, %v53
    %v60 = vmul.f32 %v27, %v57
    %v61 = vadd.f32 %v20, %v58
    %v62 = vadd.f32 %v20, %v59
    %v63 = vadd.f32 %v20, %v60
    %64 = vset.pattern.permute.xlu0 1
    %65 = vperm.xlu0 %64, %v15
    %v66 = vpop.permute.xlu0 %65
    %v68 = vlaneseq
    %v69 = vshrl.u32 %v68, 7
    %v70 = vsub.s32 1, %v69
    %v71 = vrot.slane %v22, %v70
    %v72 = vlaneseq
    %v73 = vshrl.u32 %v72, 7
    %v74 = vsub.s32 5, %v73
    %v75 = vrot.slane %v22, %v74
    %v76 = vlaneseq
    %v77 = vshrl.u32 %v76, 7
    %v78 = vsub.s32 1, %v77
    %v79 = vrot.slane %v23, %v78
    %v83 = vlaneseq
    %v84 = vshrl.u32 %v83, 7
    %v85 = vsub.s32 1, %v84
    %v86 = vrot.slane %v71, %v85
    %v87 = vlaneseq
    %v88 = vshrl.u32 %v87, 7
    %v89 = vsub.s32 1, %v88
    %v90 = vrot.slane %v75, %v89
    %v91 = vlaneseq
    %v92 = vshrl.u32 %v91, 7
    %v93 = vsub.s32 1, %v92
    %v94 = vrot.slane %v79, %v93
    %v95 = vmul.f32 %v66, %v86
    %v96 = vmul.f32 %v66, %v90
    %v97 = vmul.f32 %v66, %v94
    %v98 = vadd.f32 %v61, %v95
    %v99 = vadd.f32 %v62, %v96
    %v100 = vadd.f32 %v63, %v97
    %101 = vset.pattern.permute.xlu0 2
    %102 = vperm.xlu0 %101, %v15
    %v103 = vpop.permute.xlu0 %102
    %v105 = vlaneseq
    %v106 = vshrl.u32 %v105, 7
    %v107 = vsub.s32 2, %v106
    %v108 = vrot.slane %v22, %v107
    %v109 = vlaneseq
    %v110 = vshrl.u32 %v109, 7
    %v111 = vsub.s32 6, %v110
    %v112 = vrot.slane %v22, %v111
    %v113 = vlaneseq
    %v114 = vshrl.u32 %v113, 7
    %v115 = vsub.s32 2, %v114
    %v116 = vrot.slane %v23, %v115
    %v120 = vlaneseq
    %v121 = vshrl.u32 %v120, 7
    %v122 = vsub.s32 2, %v121
    %v123 = vrot.slane %v108, %v122
    %v124 = vlaneseq
    %v125 = vshrl.u32 %v124, 7
    %v126 = vsub.s32 2, %v125
    %v127 = vrot.slane %v112, %v126
    %v128 = vlaneseq
    %v129 = vshrl.u32 %v128, 7
    %v130 = vsub.s32 2, %v129
    %v131 = vrot.slane %v116, %v130
    %v132 = vmul.f32 %v103, %v123
    %v133 = vmul.f32 %v103, %v127
    %v134 = vmul.f32 %v103, %v131
    %v135 = vadd.f32 %v98, %v132
    %v136 = vadd.f32 %v99, %v133
    %v137 = vadd.f32 %v100, %v134
    %v138 = vmax.f32 %v135, 0.0
    %v139 = vmax.f32 %v136, 0.0
    %v140 = vmax.f32 %v137, 0.0
    %141 = vst [vmem:[#allocation2] sm:$0xff] %v138
    %142 = vst [vmem:[#allocation2 + $0x8] sm:$0xff] %v139
    %143 = vst [vmem:[#allocation2 + $0x10] sm:$0xff] %v140
    %s144 = scalar_lea.vmem %s0, 12
    %v145 = vld [vmem:[%s144] sm:$0x77]
    %v146 = vld [vmem:[%s144 + $0x8] sm:$0x7]
    %v149 = vlaneseq
    %v150 = vshrl.u32 %v149, 7
    %v151 = vsub.s32 0, %v150
    %v152 = vrot.slane %v145, %v151
    %v153 = vlaneseq
    %v154 = vshrl.u32 %v153, 7
    %v155 = vsub.s32 4, %v154
    %v156 = vrot.slane %v145, %v155
    %v157 = vlaneseq
    %v158 = vshrl.u32 %v157, 7
    %v159 = vsub.s32 0, %v158
    %v160 = vrot.slane %v146, %v159
    %v164 = vlaneseq
    %v165 = vshrl.u32 %v164, 7
    %v166 = vsub.s32 0, %v165
    %v167 = vrot.slane %v152, %v166
    %v168 = vlaneseq
    %v169 = vshrl.u32 %v168, 7
    %v170 = vsub.s32 0, %v169
    %v171 = vrot.slane %v156, %v170
    %v172 = vlaneseq
    %v173 = vshrl.u32 %v172, 7
    %v174 = vsub.s32 0, %v173
    %v175 = vrot.slane %v160, %v174
    %v176 = vmul.f32 %v27, %v167
    %v177 = vmul.f32 %v27, %v171
    %v178 = vmul.f32 %v27, %v175
    %v179 = vadd.f32 %v20, %v176
    %v180 = vadd.f32 %v20, %v177
    %v181 = vadd.f32 %v20, %v178
    %v182 = vlaneseq
    %v183 = vshrl.u32 %v182, 7
    %v184 = vsub.s32 1, %v183
    %v185 = vrot.slane %v145, %v184
    %v186 = vlaneseq
    %v187 = vshrl.u32 %v186, 7
    %v188 = vsub.s32 5, %v187
    %v189 = vrot.slane %v145, %v188
    %v190 = vlaneseq
    %v191 = vshrl.u32 %v190, 7
    %v192 = vsub.s32 1, %v191
    %v193 = vrot.slane %v146, %v192
    %v197 = vlaneseq
    %v198 = vshrl.u32 %v197, 7
    %v199 = vsub.s32 1, %v198
    %v200 = vrot.slane %v185, %v199
    %v201 = vlaneseq
    %v202 = vshrl.u32 %v201, 7
    %v203 = vsub.s32 1, %v202
    %v204 = vrot.slane %v189, %v203
    %v205 = vlaneseq
    %v206 = vshrl.u32 %v205, 7
    %v207 = vsub.s32 1, %v206
    %v208 = vrot.slane %v193, %v207
    %v209 = vmul.f32 %v66, %v200
    %v210 = vmul.f32 %v66, %v204
    %v211 = vmul.f32 %v66, %v208
    %v212 = vadd.f32 %v179, %v209
    %v213 = vadd.f32 %v180, %v210
    %v214 = vadd.f32 %v181, %v211
    %v215 = vlaneseq
    %v216 = vshrl.u32 %v215, 7
    %v217 = vsub.s32 2, %v216
    %v218 = vrot.slane %v145, %v217
    %v219 = vlaneseq
    %v220 = vshrl.u32 %v219, 7
    %v221 = vsub.s32 6, %v220
    %v222 = vrot.slane %v145, %v221
    %v223 = vlaneseq
    %v224 = vshrl.u32 %v223, 7
    %v225 = vsub.s32 2, %v224
    %v226 = vrot.slane %v146, %v225
    %v230 = vlaneseq
    %v231 = vshrl.u32 %v230, 7
    %v232 = vsub.s32 2, %v231
    %v233 = vrot.slane %v218, %v232
    %v234 = vlaneseq
    %v235 = vshrl.u32 %v234, 7
    %v236 = vsub.s32 2, %v235
    %v237 = vrot.slane %v222, %v236
    %v238 = vlaneseq
    %v239 = vshrl.u32 %v238, 7
    %v240 = vsub.s32 2, %v239
    %v241 = vrot.slane %v226, %v240
    %v242 = vmul.f32 %v103, %v233
    %v243 = vmul.f32 %v103, %v237
    %v244 = vmul.f32 %v103, %v241
    %v245 = vadd.f32 %v212, %v242
    %v246 = vadd.f32 %v213, %v243
    %v247 = vadd.f32 %v214, %v244
    %v248 = vmax.f32 %v245, 0.0
    %v249 = vmax.f32 %v246, 0.0
    %v250 = vmax.f32 %v247, 0.0
    %s251 = scalar_lea.vmem [#allocation2], 24
    %252 = vst [vmem:[%s251] sm:$0xff] %v248
    %253 = vst [vmem:[%s251 + $0x8] sm:$0xff] %v249
    %254 = vst [vmem:[%s251 + $0x10] sm:$0xff] %v250
    // Predicated region
    $region14: #{tpu_custom_call.1} parent=1 // pred_check
      _
    $region15: #{tpu_custom_call.1} parent=1 // pred_check_branch
      %256 = sbr.rel (0) target = $region17
    $region16: #{tpu_custom_call.1} parent=1 // pred_region
      %s258 = ssub.s32 768, 768
      %259 = vsyncadd [#allocation3], %s258
      %s260 = sshll.u32 [#allocation2], 4
      %s261 = int_to_ptr.vmem [resolvable:$true] %s260
      %266 = dma.vmem_to_hbm [thread:$0]  %s261, 768, %s3, [#allocation3], 384, 384, 24
    $region17: #{tpu_custom_call.1} parent=1 // pred_fallthru
      _
    // Predicated region
    $region18: #{tpu_custom_call.1} parent=1 // pred_check
      _
    $region19: #{tpu_custom_call.1} parent=1 // pred_check_branch
      %268 = sbr.rel (0) target = $region21
    $region20: #{tpu_custom_call.1} parent=1 // pred_region
      %269 = dma.done [#allocation3], 768
    $region21: #{tpu_custom_call.1} parent=1 // pred_fallthru
      _
    %270 = vsyncpa [#allocation3], 1

</llo_original>
